<compile_context>
chip_gen: v6e
topology: v6e:2x2x1
jax: 0.10.0
libtpu: 0.0.40
codegen_flags: <defaults>
</compile_context>

<pallas_src>
import functools

import jax
import jax.numpy as jnp
from jax.experimental import pallas as pl
from jax.experimental.pallas import tpu as pltpu

# TODO(synk): the reference module reads an undefined global `min_value`; we
# pin it deterministically to 0.0 as a static trace-time constant.  If it is
# meant to be a runtime scalar, pass it through SMEM instead of folding it.
MIN_VALUE = 0.0


def _convt1x1_act_kernel(w_ref, b_ref, x_ref, o_ref, *, n, c_in, c_out, lo, hi):
    """1x1 transposed-conv channel map + fused clamp_min/ReLU6.

    w_ref: (C_in*C_out,) f32 in SMEM   (scalar weights, w[ci*C_out + co])
    b_ref: (C_out,)      f32 in SMEM   (scalar biases)
    x_ref: (N*C_in,  P)  in VMEM       (pixels on lanes; P multiple of 128)
    o_ref: (N*C_out, P)  in VMEM
    """
    x = x_ref[...].astype(jnp.float32)            # (N*C_in, P)

    rows = []
    for nb in range(n):
        base = nb * c_in
        for co in range(c_out):
            # Bias folded into the first FMA; K=C_in contraction stays on the
            # VPU as scalar(SMEM) x vector FMAs (no MXU, no vector broadcasts).
            acc = x[base:base + 1, :] * w_ref[co] + b_ref[co]
            for ci in range(1, c_in):
                acc = acc + x[base + ci:base + ci + 1, :] * w_ref[ci * c_out + co]
            rows.append(jnp.clip(acc, lo, hi))     # fused clamp_min + ReLU6

    # Single lane-dense store of the whole (N*C_out, P) slab.
    o_ref[...] = jnp.concatenate(rows, axis=0).astype(o_ref.dtype)


def model_forward(x_nchw, weight, bias, *, min_value=MIN_VALUE):
    """x_nchw: (N, C_in, H, W); weight: (C_in, C_out); bias: (C_out,)."""
    N, C_in, H, W = x_nchw.shape
    C_out = weight.shape[1]
    P = H * W                                      # full, lane-aligned pixel slab

    # Free row-major reshapes: batch collapsed onto sublanes, pixels on lanes.
    x2d = x_nchw.reshape(N * C_in, P)
    w_flat = weight.reshape(C_in * C_out)          # SMEM scalars (no padded VMEM tile)
    b_flat = bias.reshape(C_out)

    # Fold clamp_min(min_value) followed by ReLU6 into one clip:
    # min(max(max(v, m), 0), 6) == min(max(v, max(m, 0)), 6).
    lo = max(float(min_value), 0.0)
    hi = 6.0

    out_flat = pl.pallas_call(
        functools.partial(_convt1x1_act_kernel,
                          n=N, c_in=C_in, c_out=C_out, lo=lo, hi=hi),
        out_shape=jax.ShapeDtypeStruct((N * C_out, P), x_nchw.dtype),
        in_specs=[
            pl.BlockSpec(memory_space=pltpu.MemorySpace.SMEM),   # weight scalars
            pl.BlockSpec(memory_space=pltpu.MemorySpace.SMEM),   # bias scalars
            pl.BlockSpec(memory_space=pltpu.MemorySpace.VMEM),   # x slab
        ],
        out_specs=pl.BlockSpec(memory_space=pltpu.MemorySpace.VMEM),
    )(w_flat, b_flat, x2d)

    # (N*C_out, H*W) row-major is bit-identical to NCHW: free reshape.
    # padding=1 on a 1x1/stride-1 transposed conv == crop 1 px per border,
    # applied on the output (post-kernel) so the kernel sees 128-multiple lanes.
    # TODO(synk): when scaling N/H/W, tile the pixel axis in multiples of 128
    # with a "parallel" grid axis (and roughly half the v6e per-step tile on
    # v7x's 64 MiB VMEM) so both TensorCores split this mem-bound channel map.
    return out_flat.reshape(N, C_out, H, W)[:, :, 1:H - 1, 1:W - 1]


def _reference(x_nchw, weight, bias, *, min_value=MIN_VALUE):
    N, C_in, H, W = x_nchw.shape
    x_crop = x_nchw[:, :, 1:H - 1, 1:W - 1]
    v1 = jnp.einsum("nchw,co->nohw", x_crop, weight) + bias[None, :, None, None]
    v2 = jnp.maximum(v1, min_value)
    return jnp.clip(v2, 0.0, 6.0)


if __name__ == "__main__":
    key = jax.random.PRNGKey(0)
    kx, kw, kb = jax.random.split(key, 3)

    # Small shapes consistent with the module: batch=2, C_in=4, spatial=16.
    N, C_in, H, W = 2, 4, 16, 16
    C_out = 10

    x = jax.random.normal(kx, (N, C_in, H, W), dtype=jnp.float32)
    # ConvTranspose2d weight is (C_in, C_out, 1, 1); we use its (C_in, C_out) view.
    weight = jax.random.normal(kw, (C_in, C_out), dtype=jnp.float32) * 0.1
    bias = jax.random.normal(kb, (C_out,), dtype=jnp.float32) * 0.1

    out = jax.block_until_ready(model_forward(x, weight, bias))
    ref = jax.block_until_ready(_reference(x, weight, bias))

    assert out.shape == (N, C_out, H - 2, W - 2), out.shape
    assert jnp.allclose(out, ref, atol=1e-5, rtol=1e-5), "mismatch vs reference"
    print("KERNEL_OK")
</pallas_src>

<mosaic_0001>
module attributes {stable_mosaic.version = 11 : i64} {
  func.func @_convt1x1_act_kernel(%arg0: memref<40xf32, #tpu.memory_space<smem>>, %arg1: memref<10xf32, #tpu.memory_space<smem>>, %arg2: memref<8x256xf32, #tpu.memory_space<vmem>>, %arg3: memref<20x256xf32, #tpu.memory_space<vmem>>) attributes {dimension_semantics = [], scalar_prefetch = 0 : i64, scratch_operands = 0 : i64, tpu.core_type = #tpu.core_type<tc>} {
    %c0 = arith.constant 0 : index
    %c0_0 = arith.constant 0 : index
    %0 = vector.load %arg2[%c0, %c0_0] : memref<8x256xf32, #tpu.memory_space<vmem>>, vector<8x256xf32>
    %1 = vector.extract_strided_slice %0 {offsets = [0, 0], sizes = [1, 256], strides = [1, 1]} : vector<8x256xf32> to vector<1x256xf32>
    %c0_1 = arith.constant 0 : index
    %2 = memref.load %arg0[%c0_1] : memref<40xf32, #tpu.memory_space<smem>>
    %3 = vector.broadcast %2 : f32 to vector<1x256xf32>
    %4 = arith.mulf %1, %3 : vector<1x256xf32>
    %c0_2 = arith.constant 0 : index
    %5 = memref.load %arg1[%c0_2] : memref<10xf32, #tpu.memory_space<smem>>
    %6 = vector.broadcast %5 : f32 to vector<1x256xf32>
    %7 = arith.addf %4, %6 : vector<1x256xf32>
    %8 = vector.extract_strided_slice %0 {offsets = [1, 0], sizes = [1, 256], strides = [1, 1]} : vector<8x256xf32> to vector<1x256xf32>
    %c10 = arith.constant 10 : index
    %9 = memref.load %arg0[%c10] : memref<40xf32, #tpu.memory_space<smem>>
    %10 = vector.broadcast %9 : f32 to vector<1x256xf32>
    %11 = arith.mulf %8, %10 : vector<1x256xf32>
    %12 = arith.addf %7, %11 : vector<1x256xf32>
    %13 = vector.extract_strided_slice %0 {offsets = [2, 0], sizes = [1, 256], strides = [1, 1]} : vector<8x256xf32> to vector<1x256xf32>
    %c20 = arith.constant 20 : index
    %14 = memref.load %arg0[%c20] : memref<40xf32, #tpu.memory_space<smem>>
    %15 = vector.broadcast %14 : f32 to vector<1x256xf32>
    %16 = arith.mulf %13, %15 : vector<1x256xf32>
    %17 = arith.addf %12, %16 : vector<1x256xf32>
    %18 = vector.extract_strided_slice %0 {offsets = [3, 0], sizes = [1, 256], strides = [1, 1]} : vector<8x256xf32> to vector<1x256xf32>
    %c30 = arith.constant 30 : index
    %19 = memref.load %arg0[%c30] : memref<40xf32, #tpu.memory_space<smem>>
    %20 = vector.broadcast %19 : f32 to vector<1x256xf32>
    %21 = arith.mulf %18, %20 : vector<1x256xf32>
    %22 = arith.addf %17, %21 : vector<1x256xf32>
    %cst = arith.constant 0.000000e+00 : f32
    %cst_3 = arith.constant 6.000000e+00 : f32
    %23 = vector.broadcast %cst : f32 to vector<1x256xf32>
    %24 = arith.maximumf %23, %22 : vector<1x256xf32>
    %25 = vector.broadcast %cst_3 : f32 to vector<1x256xf32>
    %26 = arith.minimumf %25, %24 : vector<1x256xf32>
    %27 = vector.extract_strided_slice %0 {offsets = [0, 0], sizes = [1, 256], strides = [1, 1]} : vector<8x256xf32> to vector<1x256xf32>
    %c1 = arith.constant 1 : index
    %28 = memref.load %arg0[%c1] : memref<40xf32, #tpu.memory_space<smem>>
    %29 = vector.broadcast %28 : f32 to vector<1x256xf32>
    %30 = arith.mulf %27, %29 : vector<1x256xf32>
    %c1_4 = arith.constant 1 : index
    %31 = memref.load %arg1[%c1_4] : memref<10xf32, #tpu.memory_space<smem>>
    %32 = vector.broadcast %31 : f32 to vector<1x256xf32>
    %33 = arith.addf %30, %32 : vector<1x256xf32>
    %34 = vector.extract_strided_slice %0 {offsets = [1, 0], sizes = [1, 256], strides = [1, 1]} : vector<8x256xf32> to vector<1x256xf32>
    %c11 = arith.constant 11 : index
    %35 = memref.load %arg0[%c11] : memref<40xf32, #tpu.memory_space<smem>>
    %36 = vector.broadcast %35 : f32 to vector<1x256xf32>
    %37 = arith.mulf %34, %36 : vector<1x256xf32>
    %38 = arith.addf %33, %37 : vector<1x256xf32>
    %39 = vector.extract_strided_slice %0 {offsets = [2, 0], sizes = [1, 256], strides = [1, 1]} : vector<8x256xf32> to vector<1x256xf32>
    %c21 = arith.constant 21 : index
    %40 = memref.load %arg0[%c21] : memref<40xf32, #tpu.memory_space<smem>>
    %41 = vector.broadcast %40 : f32 to vector<1x256xf32>
    %42 = arith.mulf %39, %41 : vector<1x256xf32>
    %43 = arith.addf %38, %42 : vector<1x256xf32>
    %44 = vector.extract_strided_slice %0 {offsets = [3, 0], sizes = [1, 256], strides = [1, 1]} : vector<8x256xf32> to vector<1x256xf32>
    %c31 = arith.constant 31 : index
    %45 = memref.load %arg0[%c31] : memref<40xf32, #tpu.memory_space<smem>>
    %46 = vector.broadcast %45 : f32 to vector<1x256xf32>
    %47 = arith.mulf %44, %46 : vector<1x256xf32>
    %48 = arith.addf %43, %47 : vector<1x256xf32>
    %cst_5 = arith.constant 0.000000e+00 : f32
    %cst_6 = arith.constant 6.000000e+00 : f32
    %49 = vector.broadcast %cst_5 : f32 to vector<1x256xf32>
    %50 = arith.maximumf %49, %48 : vector<1x256xf32>
    %51 = vector.broadcast %cst_6 : f32 to vector<1x256xf32>
    %52 = arith.minimumf %51, %50 : vector<1x256xf32>
    %53 = vector.extract_strided_slice %0 {offsets = [0, 0], sizes = [1, 256], strides = [1, 1]} : vector<8x256xf32> to vector<1x256xf32>
    %c2 = arith.constant 2 : index
    %54 = memref.load %arg0[%c2] : memref<40xf32, #tpu.memory_space<smem>>
    %55 = vector.broadcast %54 : f32 to vector<1x256xf32>
    %56 = arith.mulf %53, %55 : vector<1x256xf32>
    %c2_7 = arith.constant 2 : index
    %57 = memref.load %arg1[%c2_7] : memref<10xf32, #tpu.memory_space<smem>>
    %58 = vector.broadcast %57 : f32 to vector<1x256xf32>
    %59 = arith.addf %56, %58 : vector<1x256xf32>
    %60 = vector.extract_strided_slice %0 {offsets = [1, 0], sizes = [1, 256], strides = [1, 1]} : vector<8x256xf32> to vector<1x256xf32>
    %c12 = arith.constant 12 : index
    %61 = memref.load %arg0[%c12] : memref<40xf32, #tpu.memory_space<smem>>
    %62 = vector.broadcast %61 : f32 to vector<1x256xf32>
    %63 = arith.mulf %60, %62 : vector<1x256xf32>
    %64 = arith.addf %59, %63 : vector<1x256xf32>
    %65 = vector.extract_strided_slice %0 {offsets = [2, 0], sizes = [1, 256], strides = [1, 1]} : vector<8x256xf32> to vector<1x256xf32>
    %c22 = arith.constant 22 : index
    %66 = memref.load %arg0[%c22] : memref<40xf32, #tpu.memory_space<smem>>
    %67 = vector.broadcast %66 : f32 to vector<1x256xf32>
    %68 = arith.mulf %65, %67 : vector<1x256xf32>
    %69 = arith.addf %64, %68 : vector<1x256xf32>
    %70 = vector.extract_strided_slice %0 {offsets = [3, 0], sizes = [1, 256], strides = [1, 1]} : vector<8x256xf32> to vector<1x256xf32>
    %c32 = arith.constant 32 : index
    %71 = memref.load %arg0[%c32] : memref<40xf32, #tpu.memory_space<smem>>
    %72 = vector.broadcast %71 : f32 to vector<1x256xf32>
    %73 = arith.mulf %70, %72 : vector<1x256xf32>
    %74 = arith.addf %69, %73 : vector<1x256xf32>
    %cst_8 = arith.constant 0.000000e+00 : f32
    %cst_9 = arith.constant 6.000000e+00 : f32
    %75 = vector.broadcast %cst_8 : f32 to vector<1x256xf32>
    %76 = arith.maximumf %75, %74 : vector<1x256xf32>
    %77 = vector.broadcast %cst_9 : f32 to vector<1x256xf32>
    %78 = arith.minimumf %77, %76 : vector<1x256xf32>
    %79 = vector.extract_strided_slice %0 {offsets = [0, 0], sizes = [1, 256], strides = [1, 1]} : vector<8x256xf32> to vector<1x256xf32>
    %c3 = arith.constant 3 : index
    %80 = memref.load %arg0[%c3] : memref<40xf32, #tpu.memory_space<smem>>
    %81 = vector.broadcast %80 : f32 to vector<1x256xf32>
    %82 = arith.mulf %79, %81 : vector<1x256xf32>
    %c3_10 = arith.constant 3 : index
    %83 = memref.load %arg1[%c3_10] : memref<10xf32, #tpu.memory_space<smem>>
    %84 = vector.broadcast %83 : f32 to vector<1x256xf32>
    %85 = arith.addf %82, %84 : vector<1x256xf32>
    %86 = vector.extract_strided_slice %0 {offsets = [1, 0], sizes = [1, 256], strides = [1, 1]} : vector<8x256xf32> to vector<1x256xf32>
    %c13 = arith.constant 13 : index
    %87 = memref.load %arg0[%c13] : memref<40xf32, #tpu.memory_space<smem>>
    %88 = vector.broadcast %87 : f32 to vector<1x256xf32>
    %89 = arith.mulf %86, %88 : vector<1x256xf32>
    %90 = arith.addf %85, %89 : vector<1x256xf32>
    %91 = vector.extract_strided_slice %0 {offsets = [2, 0], sizes = [1, 256], strides = [1, 1]} : vector<8x256xf32> to vector<1x256xf32>
    %c23 = arith.constant 23 : index
    %92 = memref.load %arg0[%c23] : memref<40xf32, #tpu.memory_space<smem>>
    %93 = vector.broadcast %92 : f32 to vector<1x256xf32>
    %94 = arith.mulf %91, %93 : vector<1x256xf32>
    %95 = arith.addf %90, %94 : vector<1x256xf32>
    %96 = vector.extract_strided_slice %0 {offsets = [3, 0], sizes = [1, 256], strides = [1, 1]} : vector<8x256xf32> to vector<1x256xf32>
    %c33 = arith.constant 33 : index
    %97 = memref.load %arg0[%c33] : memref<40xf32, #tpu.memory_space<smem>>
    %98 = vector.broadcast %97 : f32 to vector<1x256xf32>
    %99 = arith.mulf %96, %98 : vector<1x256xf32>
    %100 = arith.addf %95, %99 : vector<1x256xf32>
    %cst_11 = arith.constant 0.000000e+00 : f32
    %cst_12 = arith.constant 6.000000e+00 : f32
    %101 = vector.broadcast %cst_11 : f32 to vector<1x256xf32>
    %102 = arith.maximumf %101, %100 : vector<1x256xf32>
    %103 = vector.broadcast %cst_12 : f32 to vector<1x256xf32>
    %104 = arith.minimumf %103, %102 : vector<1x256xf32>
    %105 = vector.extract_strided_slice %0 {offsets = [0, 0], sizes = [1, 256], strides = [1, 1]} : vector<8x256xf32> to vector<1x256xf32>
    %c4 = arith.constant 4 : index
    %106 = memref.load %arg0[%c4] : memref<40xf32, #tpu.memory_space<smem>>
    %107 = vector.broadcast %106 : f32 to vector<1x256xf32>
    %108 = arith.mulf %105, %107 : vector<1x256xf32>
    %c4_13 = arith.constant 4 : index
    %109 = memref.load %arg1[%c4_13] : memref<10xf32, #tpu.memory_space<smem>>
    %110 = vector.broadcast %109 : f32 to vector<1x256xf32>
    %111 = arith.addf %108, %110 : vector<1x256xf32>
    %112 = vector.extract_strided_slice %0 {offsets = [1, 0], sizes = [1, 256], strides = [1, 1]} : vector<8x256xf32> to vector<1x256xf32>
    %c14 = arith.constant 14 : index
    %113 = memref.load %arg0[%c14] : memref<40xf32, #tpu.memory_space<smem>>
    %114 = vector.broadcast %113 : f32 to vector<1x256xf32>
    %115 = arith.mulf %112, %114 : vector<1x256xf32>
    %116 = arith.addf %111, %115 : vector<1x256xf32>
    %117 = vector.extract_strided_slice %0 {offsets = [2, 0], sizes = [1, 256], strides = [1, 1]} : vector<8x256xf32> to vector<1x256xf32>
    %c24 = arith.constant 24 : index
    %118 = memref.load %arg0[%c24] : memref<40xf32, #tpu.memory_space<smem>>
    %119 = vector.broadcast %118 : f32 to vector<1x256xf32>
    %120 = arith.mulf %117, %119 : vector<1x256xf32>
    %121 = arith.addf %116, %120 : vector<1x256xf32>
    %122 = vector.extract_strided_slice %0 {offsets = [3, 0], sizes = [1, 256], strides = [1, 1]} : vector<8x256xf32> to vector<1x256xf32>
    %c34 = arith.constant 34 : index
    %123 = memref.load %arg0[%c34] : memref<40xf32, #tpu.memory_space<smem>>
    %124 = vector.broadcast %123 : f32 to vector<1x256xf32>
    %125 = arith.mulf %122, %124 : vector<1x256xf32>
    %126 = arith.addf %121, %125 : vector<1x256xf32>
    %cst_14 = arith.constant 0.000000e+00 : f32
    %cst_15 = arith.constant 6.000000e+00 : f32
    %127 = vector.broadcast %cst_14 : f32 to vector<1x256xf32>
    %128 = arith.maximumf %127, %126 : vector<1x256xf32>
    %129 = vector.broadcast %cst_15 : f32 to vector<1x256xf32>
    %130 = arith.minimumf %129, %128 : vector<1x256xf32>
    %131 = vector.extract_strided_slice %0 {offsets = [0, 0], sizes = [1, 256], strides = [1, 1]} : vector<8x256xf32> to vector<1x256xf32>
    %c5 = arith.constant 5 : index
    %132 = memref.load %arg0[%c5] : memref<40xf32, #tpu.memory_space<smem>>
    %133 = vector.broadcast %132 : f32 to vector<1x256xf32>
    %134 = arith.mulf %131, %133 : vector<1x256xf32>
    %c5_16 = arith.constant 5 : index
    %135 = memref.load %arg1[%c5_16] : memref<10xf32, #tpu.memory_space<smem>>
    %136 = vector.broadcast %135 : f32 to vector<1x256xf32>
    %137 = arith.addf %134, %136 : vector<1x256xf32>
    %138 = vector.extract_strided_slice %0 {offsets = [1, 0], sizes = [1, 256], strides = [1, 1]} : vector<8x256xf32> to vector<1x256xf32>
    %c15 = arith.constant 15 : index
    %139 = memref.load %arg0[%c15] : memref<40xf32, #tpu.memory_space<smem>>
    %140 = vector.broadcast %139 : f32 to vector<1x256xf32>
    %141 = arith.mulf %138, %140 : vector<1x256xf32>
    %142 = arith.addf %137, %141 : vector<1x256xf32>
    %143 = vector.extract_strided_slice %0 {offsets = [2, 0], sizes = [1, 256], strides = [1, 1]} : vector<8x256xf32> to vector<1x256xf32>
    %c25 = arith.constant 25 : index
    %144 = memref.load %arg0[%c25] : memref<40xf32, #tpu.memory_space<smem>>
    %145 = vector.broadcast %144 : f32 to vector<1x256xf32>
    %146 = arith.mulf %143, %145 : vector<1x256xf32>
    %147 = arith.addf %142, %146 : vector<1x256xf32>
    %148 = vector.extract_strided_slice %0 {offsets = [3, 0], sizes = [1, 256], strides = [1, 1]} : vector<8x256xf32> to vector<1x256xf32>
    %c35 = arith.constant 35 : index
    %149 = memref.load %arg0[%c35] : memref<40xf32, #tpu.memory_space<smem>>
    %150 = vector.broadcast %149 : f32 to vector<1x256xf32>
    %151 = arith.mulf %148, %150 : vector<1x256xf32>
    %152 = arith.addf %147, %151 : vector<1x256xf32>
    %cst_17 = arith.constant 0.000000e+00 : f32
    %cst_18 = arith.constant 6.000000e+00 : f32
    %153 = vector.broadcast %cst_17 : f32 to vector<1x256xf32>
    %154 = arith.maximumf %153, %152 : vector<1x256xf32>
    %155 = vector.broadcast %cst_18 : f32 to vector<1x256xf32>
    %156 = arith.minimumf %155, %154 : vector<1x256xf32>
    %157 = vector.extract_strided_slice %0 {offsets = [0, 0], sizes = [1, 256], strides = [1, 1]} : vector<8x256xf32> to vector<1x256xf32>
    %c6 = arith.constant 6 : index
    %158 = memref.load %arg0[%c6] : memref<40xf32, #tpu.memory_space<smem>>
    %159 = vector.broadcast %158 : f32 to vector<1x256xf32>
    %160 = arith.mulf %157, %159 : vector<1x256xf32>
    %c6_19 = arith.constant 6 : index
    %161 = memref.load %arg1[%c6_19] : memref<10xf32, #tpu.memory_space<smem>>
    %162 = vector.broadcast %161 : f32 to vector<1x256xf32>
    %163 = arith.addf %160, %162 : vector<1x256xf32>
    %164 = vector.extract_strided_slice %0 {offsets = [1, 0], sizes = [1, 256], strides = [1, 1]} : vector<8x256xf32> to vector<1x256xf32>
    %c16 = arith.constant 16 : index
    %165 = memref.load %arg0[%c16] : memref<40xf32, #tpu.memory_space<smem>>
    %166 = vector.broadcast %165 : f32 to vector<1x256xf32>
    %167 = arith.mulf %164, %166 : vector<1x256xf32>
    %168 = arith.addf %163, %167 : vector<1x256xf32>
    %169 = vector.extract_strided_slice %0 {offsets = [2, 0], sizes = [1, 256], strides = [1, 1]} : vector<8x256xf32> to vector<1x256xf32>
    %c26 = arith.constant 26 : index
    %170 = memref.load %arg0[%c26] : memref<40xf32, #tpu.memory_space<smem>>
    %171 = vector.broadcast %170 : f32 to vector<1x256xf32>
    %172 = arith.mulf %169, %171 : vector<1x256xf32>
    %173 = arith.addf %168, %172 : vector<1x256xf32>
    %174 = vector.extract_strided_slice %0 {offsets = [3, 0], sizes = [1, 256], strides = [1, 1]} : vector<8x256xf32> to vector<1x256xf32>
    %c36 = arith.constant 36 : index
    %175 = memref.load %arg0[%c36] : memref<40xf32, #tpu.memory_space<smem>>
    %176 = vector.broadcast %175 : f32 to vector<1x256xf32>
    %177 = arith.mulf %174, %176 : vector<1x256xf32>
    %178 = arith.addf %173, %177 : vector<1x256xf32>
    %cst_20 = arith.constant 0.000000e+00 : f32
    %cst_21 = arith.constant 6.000000e+00 : f32
    %179 = vector.broadcast %cst_20 : f32 to vector<1x256xf32>
    %180 = arith.maximumf %179, %178 : vector<1x256xf32>
    %181 = vector.broadcast %cst_21 : f32 to vector<1x256xf32>
    %182 = arith.minimumf %181, %180 : vector<1x256xf32>
    %183 = vector.extract_strided_slice %0 {offsets = [0, 0], sizes = [1, 256], strides = [1, 1]} : vector<8x256xf32> to vector<1x256xf32>
    %c7 = arith.constant 7 : index
    %184 = memref.load %arg0[%c7] : memref<40xf32, #tpu.memory_space<smem>>
    %185 = vector.broadcast %184 : f32 to vector<1x256xf32>
    %186 = arith.mulf %183, %185 : vector<1x256xf32>
    %c7_22 = arith.constant 7 : index
    %187 = memref.load %arg1[%c7_22] : memref<10xf32, #tpu.memory_space<smem>>
    %188 = vector.broadcast %187 : f32 to vector<1x256xf32>
    %189 = arith.addf %186, %188 : vector<1x256xf32>
    %190 = vector.extract_strided_slice %0 {offsets = [1, 0], sizes = [1, 256], strides = [1, 1]} : vector<8x256xf32> to vector<1x256xf32>
    %c17 = arith.constant 17 : index
    %191 = memref.load %arg0[%c17] : memref<40xf32, #tpu.memory_space<smem>>
    %192 = vector.broadcast %191 : f32 to vector<1x256xf32>
    %193 = arith.mulf %190, %192 : vector<1x256xf32>
    %194 = arith.addf %189, %193 : vector<1x256xf32>
    %195 = vector.extract_strided_slice %0 {offsets = [2, 0], sizes = [1, 256], strides = [1, 1]} : vector<8x256xf32> to vector<1x256xf32>
    %c27 = arith.constant 27 : index
    %196 = memref.load %arg0[%c27] : memref<40xf32, #tpu.memory_space<smem>>
    %197 = vector.broadcast %196 : f32 to vector<1x256xf32>
    %198 = arith.mulf %195, %197 : vector<1x256xf32>
    %199 = arith.addf %194, %198 : vector<1x256xf32>
    %200 = vector.extract_strided_slice %0 {offsets = [3, 0], sizes = [1, 256], strides = [1, 1]} : vector<8x256xf32> to vector<1x256xf32>
    %c37 = arith.constant 37 : index
    %201 = memref.load %arg0[%c37] : memref<40xf32, #tpu.memory_space<smem>>
    %202 = vector.broadcast %201 : f32 to vector<1x256xf32>
    %203 = arith.mulf %200, %202 : vector<1x256xf32>
    %204 = arith.addf %199, %203 : vector<1x256xf32>
    %cst_23 = arith.constant 0.000000e+00 : f32
    %cst_24 = arith.constant 6.000000e+00 : f32
    %205 = vector.broadcast %cst_23 : f32 to vector<1x256xf32>
    %206 = arith.maximumf %205, %204 : vector<1x256xf32>
    %207 = vector.broadcast %cst_24 : f32 to vector<1x256xf32>
    %208 = arith.minimumf %207, %206 : vector<1x256xf32>
    %209 = vector.extract_strided_slice %0 {offsets = [0, 0], sizes = [1, 256], strides = [1, 1]} : vector<8x256xf32> to vector<1x256xf32>
    %c8 = arith.constant 8 : index
    %210 = memref.load %arg0[%c8] : memref<40xf32, #tpu.memory_space<smem>>
    %211 = vector.broadcast %210 : f32 to vector<1x256xf32>
    %212 = arith.mulf %209, %211 : vector<1x256xf32>
    %c8_25 = arith.constant 8 : index
    %213 = memref.load %arg1[%c8_25] : memref<10xf32, #tpu.memory_space<smem>>
    %214 = vector.broadcast %213 : f32 to vector<1x256xf32>
    %215 = arith.addf %212, %214 : vector<1x256xf32>
    %216 = vector.extract_strided_slice %0 {offsets = [1, 0], sizes = [1, 256], strides = [1, 1]} : vector<8x256xf32> to vector<1x256xf32>
    %c18 = arith.constant 18 : index
    %217 = memref.load %arg0[%c18] : memref<40xf32, #tpu.memory_space<smem>>
    %218 = vector.broadcast %217 : f32 to vector<1x256xf32>
    %219 = arith.mulf %216, %218 : vector<1x256xf32>
    %220 = arith.addf %215, %219 : vector<1x256xf32>
    %221 = vector.extract_strided_slice %0 {offsets = [2, 0], sizes = [1, 256], strides = [1, 1]} : vector<8x256xf32> to vector<1x256xf32>
    %c28 = arith.constant 28 : index
    %222 = memref.load %arg0[%c28] : memref<40xf32, #tpu.memory_space<smem>>
    %223 = vector.broadcast %222 : f32 to vector<1x256xf32>
    %224 = arith.mulf %221, %223 : vector<1x256xf32>
    %225 = arith.addf %220, %224 : vector<1x256xf32>
    %226 = vector.extract_strided_slice %0 {offsets = [3, 0], sizes = [1, 256], strides = [1, 1]} : vector<8x256xf32> to vector<1x256xf32>
    %c38 = arith.constant 38 : index
    %227 = memref.load %arg0[%c38] : memref<40xf32, #tpu.memory_space<smem>>
    %228 = vector.broadcast %227 : f32 to vector<1x256xf32>
    %229 = arith.mulf %226, %228 : vector<1x256xf32>
    %230 = arith.addf %225, %229 : vector<1x256xf32>
    %cst_26 = arith.constant 0.000000e+00 : f32
    %cst_27 = arith.constant 6.000000e+00 : f32
    %231 = vector.broadcast %cst_26 : f32 to vector<1x256xf32>
    %232 = arith.maximumf %231, %230 : vector<1x256xf32>
    %233 = vector.broadcast %cst_27 : f32 to vector<1x256xf32>
    %234 = arith.minimumf %233, %232 : vector<1x256xf32>
    %235 = vector.extract_strided_slice %0 {offsets = [0, 0], sizes = [1, 256], strides = [1, 1]} : vector<8x256xf32> to vector<1x256xf32>
    %c9 = arith.constant 9 : index
    %236 = memref.load %arg0[%c9] : memref<40xf32, #tpu.memory_space<smem>>
    %237 = vector.broadcast %236 : f32 to vector<1x256xf32>
    %238 = arith.mulf %235, %237 : vector<1x256xf32>
    %c9_28 = arith.constant 9 : index
    %239 = memref.load %arg1[%c9_28] : memref<10xf32, #tpu.memory_space<smem>>
    %240 = vector.broadcast %239 : f32 to vector<1x256xf32>
    %241 = arith.addf %238, %240 : vector<1x256xf32>
    %242 = vector.extract_strided_slice %0 {offsets = [1, 0], sizes = [1, 256], strides = [1, 1]} : vector<8x256xf32> to vector<1x256xf32>
    %c19 = arith.constant 19 : index
    %243 = memref.load %arg0[%c19] : memref<40xf32, #tpu.memory_space<smem>>
    %244 = vector.broadcast %243 : f32 to vector<1x256xf32>
    %245 = arith.mulf %242, %244 : vector<1x256xf32>
    %246 = arith.addf %241, %245 : vector<1x256xf32>
    %247 = vector.extract_strided_slice %0 {offsets = [2, 0], sizes = [1, 256], strides = [1, 1]} : vector<8x256xf32> to vector<1x256xf32>
    %c29 = arith.constant 29 : index
    %248 = memref.load %arg0[%c29] : memref<40xf32, #tpu.memory_space<smem>>
    %249 = vector.broadcast %248 : f32 to vector<1x256xf32>
    %250 = arith.mulf %247, %249 : vector<1x256xf32>
    %251 = arith.addf %246, %250 : vector<1x256xf32>
    %252 = vector.extract_strided_slice %0 {offsets = [3, 0], sizes = [1, 256], strides = [1, 1]} : vector<8x256xf32> to vector<1x256xf32>
    %c39 = arith.constant 39 : index
    %253 = memref.load %arg0[%c39] : memref<40xf32, #tpu.memory_space<smem>>
    %254 = vector.broadcast %253 : f32 to vector<1x256xf32>
    %255 = arith.mulf %252, %254 : vector<1x256xf32>
    %256 = arith.addf %251, %255 : vector<1x256xf32>
    %cst_29 = arith.constant 0.000000e+00 : f32
    %cst_30 = arith.constant 6.000000e+00 : f32
    %257 = vector.broadcast %cst_29 : f32 to vector<1x256xf32>
    %258 = arith.maximumf %257, %256 : vector<1x256xf32>
    %259 = vector.broadcast %cst_30 : f32 to vector<1x256xf32>
    %260 = arith.minimumf %259, %258 : vector<1x256xf32>
    %261 = vector.extract_strided_slice %0 {offsets = [4, 0], sizes = [1, 256], strides = [1, 1]} : vector<8x256xf32> to vector<1x256xf32>
    %c0_31 = arith.constant 0 : index
    %262 = memref.load %arg0[%c0_31] : memref<40xf32, #tpu.memory_space<smem>>
    %263 = vector.broadcast %262 : f32 to vector<1x256xf32>
    %264 = arith.mulf %261, %263 : vector<1x256xf32>
    %c0_32 = arith.constant 0 : index
    %265 = memref.load %arg1[%c0_32] : memref<10xf32, #tpu.memory_space<smem>>
    %266 = vector.broadcast %265 : f32 to vector<1x256xf32>
    %267 = arith.addf %264, %266 : vector<1x256xf32>
    %268 = vector.extract_strided_slice %0 {offsets = [5, 0], sizes = [1, 256], strides = [1, 1]} : vector<8x256xf32> to vector<1x256xf32>
    %c10_33 = arith.constant 10 : index
    %269 = memref.load %arg0[%c10_33] : memref<40xf32, #tpu.memory_space<smem>>
    %270 = vector.broadcast %269 : f32 to vector<1x256xf32>
    %271 = arith.mulf %268, %270 : vector<1x256xf32>
    %272 = arith.addf %267, %271 : vector<1x256xf32>
    %273 = vector.extract_strided_slice %0 {offsets = [6, 0], sizes = [1, 256], strides = [1, 1]} : vector<8x256xf32> to vector<1x256xf32>
    %c20_34 = arith.constant 20 : index
    %274 = memref.load %arg0[%c20_34] : memref<40xf32, #tpu.memory_space<smem>>
    %275 = vector.broadcast %274 : f32 to vector<1x256xf32>
    %276 = arith.mulf %273, %275 : vector<1x256xf32>
    %277 = arith.addf %272, %276 : vector<1x256xf32>
    %278 = vector.extract_strided_slice %0 {offsets = [7, 0], sizes = [1, 256], strides = [1, 1]} : vector<8x256xf32> to vector<1x256xf32>
    %c30_35 = arith.constant 30 : index
    %279 = memref.load %arg0[%c30_35] : memref<40xf32, #tpu.memory_space<smem>>
    %280 = vector.broadcast %279 : f32 to vector<1x256xf32>
    %281 = arith.mulf %278, %280 : vector<1x256xf32>
    %282 = arith.addf %277, %281 : vector<1x256xf32>
    %cst_36 = arith.constant 0.000000e+00 : f32
    %cst_37 = arith.constant 6.000000e+00 : f32
    %283 = vector.broadcast %cst_36 : f32 to vector<1x256xf32>
    %284 = arith.maximumf %283, %282 : vector<1x256xf32>
    %285 = vector.broadcast %cst_37 : f32 to vector<1x256xf32>
    %286 = arith.minimumf %285, %284 : vector<1x256xf32>
    %287 = vector.extract_strided_slice %0 {offsets = [4, 0], sizes = [1, 256], strides = [1, 1]} : vector<8x256xf32> to vector<1x256xf32>
    %c1_38 = arith.constant 1 : index
    %288 = memref.load %arg0[%c1_38] : memref<40xf32, #tpu.memory_space<smem>>
    %289 = vector.broadcast %288 : f32 to vector<1x256xf32>
    %290 = arith.mulf %287, %289 : vector<1x256xf32>
    %c1_39 = arith.constant 1 : index
    %291 = memref.load %arg1[%c1_39] : memref<10xf32, #tpu.memory_space<smem>>
    %292 = vector.broadcast %291 : f32 to vector<1x256xf32>
    %293 = arith.addf %290, %292 : vector<1x256xf32>
    %294 = vector.extract_strided_slice %0 {offsets = [5, 0], sizes = [1, 256], strides = [1, 1]} : vector<8x256xf32> to vector<1x256xf32>
    %c11_40 = arith.constant 11 : index
    %295 = memref.load %arg0[%c11_40] : memref<40xf32, #tpu.memory_space<smem>>
    %296 = vector.broadcast %295 : f32 to vector<1x256xf32>
    %297 = arith.mulf %294, %296 : vector<1x256xf32>
    %298 = arith.addf %293, %297 : vector<1x256xf32>
    %299 = vector.extract_strided_slice %0 {offsets = [6, 0], sizes = [1, 256], strides = [1, 1]} : vector<8x256xf32> to vector<1x256xf32>
    %c21_41 = arith.constant 21 : index
    %300 = memref.load %arg0[%c21_41] : memref<40xf32, #tpu.memory_space<smem>>
    %301 = vector.broadcast %300 : f32 to vector<1x256xf32>
    %302 = arith.mulf %299, %301 : vector<1x256xf32>
    %303 = arith.addf %298, %302 : vector<1x256xf32>
    %304 = vector.extract_strided_slice %0 {offsets = [7, 0], sizes = [1, 256], strides = [1, 1]} : vector<8x256xf32> to vector<1x256xf32>
    %c31_42 = arith.constant 31 : index
    %305 = memref.load %arg0[%c31_42] : memref<40xf32, #tpu.memory_space<smem>>
    %306 = vector.broadcast %305 : f32 to vector<1x256xf32>
    %307 = arith.mulf %304, %306 : vector<1x256xf32>
    %308 = arith.addf %303, %307 : vector<1x256xf32>
    %cst_43 = arith.constant 0.000000e+00 : f32
    %cst_44 = arith.constant 6.000000e+00 : f32
    %309 = vector.broadcast %cst_43 : f32 to vector<1x256xf32>
    %310 = arith.maximumf %309, %308 : vector<1x256xf32>
    %311 = vector.broadcast %cst_44 : f32 to vector<1x256xf32>
    %312 = arith.minimumf %311, %310 : vector<1x256xf32>
    %313 = vector.extract_strided_slice %0 {offsets = [4, 0], sizes = [1, 256], strides = [1, 1]} : vector<8x256xf32> to vector<1x256xf32>
    %c2_45 = arith.constant 2 : index
    %314 = memref.load %arg0[%c2_45] : memref<40xf32, #tpu.memory_space<smem>>
    %315 = vector.broadcast %314 : f32 to vector<1x256xf32>
    %316 = arith.mulf %313, %315 : vector<1x256xf32>
    %c2_46 = arith.constant 2 : index
    %317 = memref.load %arg1[%c2_46] : memref<10xf32, #tpu.memory_space<smem>>
    %318 = vector.broadcast %317 : f32 to vector<1x256xf32>
    %319 = arith.addf %316, %318 : vector<1x256xf32>
    %320 = vector.extract_strided_slice %0 {offsets = [5, 0], sizes = [1, 256], strides = [1, 1]} : vector<8x256xf32> to vector<1x256xf32>
    %c12_47 = arith.constant 12 : index
    %321 = memref.load %arg0[%c12_47] : memref<40xf32, #tpu.memory_space<smem>>
    %322 = vector.broadcast %321 : f32 to vector<1x256xf32>
    %323 = arith.mulf %320, %322 : vector<1x256xf32>
    %324 = arith.addf %319, %323 : vector<1x256xf32>
    %325 = vector.extract_strided_slice %0 {offsets = [6, 0], sizes = [1, 256], strides = [1, 1]} : vector<8x256xf32> to vector<1x256xf32>
    %c22_48 = arith.constant 22 : index
    %326 = memref.load %arg0[%c22_48] : memref<40xf32, #tpu.memory_space<smem>>
    %327 = vector.broadcast %326 : f32 to vector<1x256xf32>
    %328 = arith.mulf %325, %327 : vector<1x256xf32>
    %329 = arith.addf %324, %328 : vector<1x256xf32>
    %330 = vector.extract_strided_slice %0 {offsets = [7, 0], sizes = [1, 256], strides = [1, 1]} : vector<8x256xf32> to vector<1x256xf32>
    %c32_49 = arith.constant 32 : index
    %331 = memref.load %arg0[%c32_49] : memref<40xf32, #tpu.memory_space<smem>>
    %332 = vector.broadcast %331 : f32 to vector<1x256xf32>
    %333 = arith.mulf %330, %332 : vector<1x256xf32>
    %334 = arith.addf %329, %333 : vector<1x256xf32>
    %cst_50 = arith.constant 0.000000e+00 : f32
    %cst_51 = arith.constant 6.000000e+00 : f32
    %335 = vector.broadcast %cst_50 : f32 to vector<1x256xf32>
    %336 = arith.maximumf %335, %334 : vector<1x256xf32>
    %337 = vector.broadcast %cst_51 : f32 to vector<1x256xf32>
    %338 = arith.minimumf %337, %336 : vector<1x256xf32>
    %339 = vector.extract_strided_slice %0 {offsets = [4, 0], sizes = [1, 256], strides = [1, 1]} : vector<8x256xf32> to vector<1x256xf32>
    %c3_52 = arith.constant 3 : index
    %340 = memref.load %arg0[%c3_52] : memref<40xf32, #tpu.memory_space<smem>>
    %341 = vector.broadcast %340 : f32 to vector<1x256xf32>
    %342 = arith.mulf %339, %341 : vector<1x256xf32>
    %c3_53 = arith.constant 3 : index
    %343 = memref.load %arg1[%c3_53] : memref<10xf32, #tpu.memory_space<smem>>
    %344 = vector.broadcast %343 : f32 to vector<1x256xf32>
    %345 = arith.addf %342, %344 : vector<1x256xf32>
    %346 = vector.extract_strided_slice %0 {offsets = [5, 0], sizes = [1, 256], strides = [1, 1]} : vector<8x256xf32> to vector<1x256xf32>
    %c13_54 = arith.constant 13 : index
    %347 = memref.load %arg0[%c13_54] : memref<40xf32, #tpu.memory_space<smem>>
    %348 = vector.broadcast %347 : f32 to vector<1x256xf32>
    %349 = arith.mulf %346, %348 : vector<1x256xf32>
    %350 = arith.addf %345, %349 : vector<1x256xf32>
    %351 = vector.extract_strided_slice %0 {offsets = [6, 0], sizes = [1, 256], strides = [1, 1]} : vector<8x256xf32> to vector<1x256xf32>
    %c23_55 = arith.constant 23 : index
    %352 = memref.load %arg0[%c23_55] : memref<40xf32, #tpu.memory_space<smem>>
    %353 = vector.broadcast %352 : f32 to vector<1x256xf32>
    %354 = arith.mulf %351, %353 : vector<1x256xf32>
    %355 = arith.addf %350, %354 : vector<1x256xf32>
    %356 = vector.extract_strided_slice %0 {offsets = [7, 0], sizes = [1, 256], strides = [1, 1]} : vector<8x256xf32> to vector<1x256xf32>
    %c33_56 = arith.constant 33 : index
    %357 = memref.load %arg0[%c33_56] : memref<40xf32, #tpu.memory_space<smem>>
    %358 = vector.broadcast %357 : f32 to vector<1x256xf32>
    %359 = arith.mulf %356, %358 : vector<1x256xf32>
    %360 = arith.addf %355, %359 : vector<1x256xf32>
    %cst_57 = arith.constant 0.000000e+00 : f32
    %cst_58 = arith.constant 6.000000e+00 : f32
    %361 = vector.broadcast %cst_57 : f32 to vector<1x256xf32>
    %362 = arith.maximumf %361, %360 : vector<1x256xf32>
    %363 = vector.broadcast %cst_58 : f32 to vector<1x256xf32>
    %364 = arith.minimumf %363, %362 : vector<1x256xf32>
    %365 = vector.extract_strided_slice %0 {offsets = [4, 0], sizes = [1, 256], strides = [1, 1]} : vector<8x256xf32> to vector<1x256xf32>
    %c4_59 = arith.constant 4 : index
    %366 = memref.load %arg0[%c4_59] : memref<40xf32, #tpu.memory_space<smem>>
    %367 = vector.broadcast %366 : f32 to vector<1x256xf32>
    %368 = arith.mulf %365, %367 : vector<1x256xf32>
    %c4_60 = arith.constant 4 : index
    %369 = memref.load %arg1[%c4_60] : memref<10xf32, #tpu.memory_space<smem>>
    %370 = vector.broadcast %369 : f32 to vector<1x256xf32>
    %371 = arith.addf %368, %370 : vector<1x256xf32>
    %372 = vector.extract_strided_slice %0 {offsets = [5, 0], sizes = [1, 256], strides = [1, 1]} : vector<8x256xf32> to vector<1x256xf32>
    %c14_61 = arith.constant 14 : index
    %373 = memref.load %arg0[%c14_61] : memref<40xf32, #tpu.memory_space<smem>>
    %374 = vector.broadcast %373 : f32 to vector<1x256xf32>
    %375 = arith.mulf %372, %374 : vector<1x256xf32>
    %376 = arith.addf %371, %375 : vector<1x256xf32>
    %377 = vector.extract_strided_slice %0 {offsets = [6, 0], sizes = [1, 256], strides = [1, 1]} : vector<8x256xf32> to vector<1x256xf32>
    %c24_62 = arith.constant 24 : index
    %378 = memref.load %arg0[%c24_62] : memref<40xf32, #tpu.memory_space<smem>>
    %379 = vector.broadcast %378 : f32 to vector<1x256xf32>
    %380 = arith.mulf %377, %379 : vector<1x256xf32>
    %381 = arith.addf %376, %380 : vector<1x256xf32>
    %382 = vector.extract_strided_slice %0 {offsets = [7, 0], sizes = [1, 256], strides = [1, 1]} : vector<8x256xf32> to vector<1x256xf32>
    %c34_63 = arith.constant 34 : index
    %383 = memref.load %arg0[%c34_63] : memref<40xf32, #tpu.memory_space<smem>>
    %384 = vector.broadcast %383 : f32 to vector<1x256xf32>
    %385 = arith.mulf %382, %384 : vector<1x256xf32>
    %386 = arith.addf %381, %385 : vector<1x256xf32>
    %cst_64 = arith.constant 0.000000e+00 : f32
    %cst_65 = arith.constant 6.000000e+00 : f32
    %387 = vector.broadcast %cst_64 : f32 to vector<1x256xf32>
    %388 = arith.maximumf %387, %386 : vector<1x256xf32>
    %389 = vector.broadcast %cst_65 : f32 to vector<1x256xf32>
    %390 = arith.minimumf %389, %388 : vector<1x256xf32>
    %391 = vector.extract_strided_slice %0 {offsets = [4, 0], sizes = [1, 256], strides = [1, 1]} : vector<8x256xf32> to vector<1x256xf32>
    %c5_66 = arith.constant 5 : index
    %392 = memref.load %arg0[%c5_66] : memref<40xf32, #tpu.memory_space<smem>>
    %393 = vector.broadcast %392 : f32 to vector<1x256xf32>
    %394 = arith.mulf %391, %393 : vector<1x256xf32>
    %c5_67 = arith.constant 5 : index
    %395 = memref.load %arg1[%c5_67] : memref<10xf32, #tpu.memory_space<smem>>
    %396 = vector.broadcast %395 : f32 to vector<1x256xf32>
    %397 = arith.addf %394, %396 : vector<1x256xf32>
    %398 = vector.extract_strided_slice %0 {offsets = [5, 0], sizes = [1, 256], strides = [1, 1]} : vector<8x256xf32> to vector<1x256xf32>
    %c15_68 = arith.constant 15 : index
    %399 = memref.load %arg0[%c15_68] : memref<40xf32, #tpu.memory_space<smem>>
    %400 = vector.broadcast %399 : f32 to vector<1x256xf32>
    %401 = arith.mulf %398, %400 : vector<1x256xf32>
    %402 = arith.addf %397, %401 : vector<1x256xf32>
    %403 = vector.extract_strided_slice %0 {offsets = [6, 0], sizes = [1, 256], strides = [1, 1]} : vector<8x256xf32> to vector<1x256xf32>
    %c25_69 = arith.constant 25 : index
    %404 = memref.load %arg0[%c25_69] : memref<40xf32, #tpu.memory_space<smem>>
    %405 = vector.broadcast %404 : f32 to vector<1x256xf32>
    %406 = arith.mulf %403, %405 : vector<1x256xf32>
    %407 = arith.addf %402, %406 : vector<1x256xf32>
    %408 = vector.extract_strided_slice %0 {offsets = [7, 0], sizes = [1, 256], strides = [1, 1]} : vector<8x256xf32> to vector<1x256xf32>
    %c35_70 = arith.constant 35 : index
    %409 = memref.load %arg0[%c35_70] : memref<40xf32, #tpu.memory_space<smem>>
    %410 = vector.broadcast %409 : f32 to vector<1x256xf32>
    %411 = arith.mulf %408, %410 : vector<1x256xf32>
    %412 = arith.addf %407, %411 : vector<1x256xf32>
    %cst_71 = arith.constant 0.000000e+00 : f32
    %cst_72 = arith.constant 6.000000e+00 : f32
    %413 = vector.broadcast %cst_71 : f32 to vector<1x256xf32>
    %414 = arith.maximumf %413, %412 : vector<1x256xf32>
    %415 = vector.broadcast %cst_72 : f32 to vector<1x256xf32>
    %416 = arith.minimumf %415, %414 : vector<1x256xf32>
    %417 = vector.extract_strided_slice %0 {offsets = [4, 0], sizes = [1, 256], strides = [1, 1]} : vector<8x256xf32> to vector<1x256xf32>
    %c6_73 = arith.constant 6 : index
    %418 = memref.load %arg0[%c6_73] : memref<40xf32, #tpu.memory_space<smem>>
    %419 = vector.broadcast %418 : f32 to vector<1x256xf32>
    %420 = arith.mulf %417, %419 : vector<1x256xf32>
    %c6_74 = arith.constant 6 : index
    %421 = memref.load %arg1[%c6_74] : memref<10xf32, #tpu.memory_space<smem>>
    %422 = vector.broadcast %421 : f32 to vector<1x256xf32>
    %423 = arith.addf %420, %422 : vector<1x256xf32>
    %424 = vector.extract_strided_slice %0 {offsets = [5, 0], sizes = [1, 256], strides = [1, 1]} : vector<8x256xf32> to vector<1x256xf32>
    %c16_75 = arith.constant 16 : index
    %425 = memref.load %arg0[%c16_75] : memref<40xf32, #tpu.memory_space<smem>>
    %426 = vector.broadcast %425 : f32 to vector<1x256xf32>
    %427 = arith.mulf %424, %426 : vector<1x256xf32>
    %428 = arith.addf %423, %427 : vector<1x256xf32>
    %429 = vector.extract_strided_slice %0 {offsets = [6, 0], sizes = [1, 256], strides = [1, 1]} : vector<8x256xf32> to vector<1x256xf32>
    %c26_76 = arith.constant 26 : index
    %430 = memref.load %arg0[%c26_76] : memref<40xf32, #tpu.memory_space<smem>>
    %431 = vector.broadcast %430 : f32 to vector<1x256xf32>
    %432 = arith.mulf %429, %431 : vector<1x256xf32>
    %433 = arith.addf %428, %432 : vector<1x256xf32>
    %434 = vector.extract_strided_slice %0 {offsets = [7, 0], sizes = [1, 256], strides = [1, 1]} : vector<8x256xf32> to vector<1x256xf32>
    %c36_77 = arith.constant 36 : index
    %435 = memref.load %arg0[%c36_77] : memref<40xf32, #tpu.memory_space<smem>>
    %436 = vector.broadcast %435 : f32 to vector<1x256xf32>
    %437 = arith.mulf %434, %436 : vector<1x256xf32>
    %438 = arith.addf %433, %437 : vector<1x256xf32>
    %cst_78 = arith.constant 0.000000e+00 : f32
    %cst_79 = arith.constant 6.000000e+00 : f32
    %439 = vector.broadcast %cst_78 : f32 to vector<1x256xf32>
    %440 = arith.maximumf %439, %438 : vector<1x256xf32>
    %441 = vector.broadcast %cst_79 : f32 to vector<1x256xf32>
    %442 = arith.minimumf %441, %440 : vector<1x256xf32>
    %443 = vector.extract_strided_slice %0 {offsets = [4, 0], sizes = [1, 256], strides = [1, 1]} : vector<8x256xf32> to vector<1x256xf32>
    %c7_80 = arith.constant 7 : index
    %444 = memref.load %arg0[%c7_80] : memref<40xf32, #tpu.memory_space<smem>>
    %445 = vector.broadcast %444 : f32 to vector<1x256xf32>
    %446 = arith.mulf %443, %445 : vector<1x256xf32>
    %c7_81 = arith.constant 7 : index
    %447 = memref.load %arg1[%c7_81] : memref<10xf32, #tpu.memory_space<smem>>
    %448 = vector.broadcast %447 : f32 to vector<1x256xf32>
    %449 = arith.addf %446, %448 : vector<1x256xf32>
    %450 = vector.extract_strided_slice %0 {offsets = [5, 0], sizes = [1, 256], strides = [1, 1]} : vector<8x256xf32> to vector<1x256xf32>
    %c17_82 = arith.constant 17 : index
    %451 = memref.load %arg0[%c17_82] : memref<40xf32, #tpu.memory_space<smem>>
    %452 = vector.broadcast %451 : f32 to vector<1x256xf32>
    %453 = arith.mulf %450, %452 : vector<1x256xf32>
    %454 = arith.addf %449, %453 : vector<1x256xf32>
    %455 = vector.extract_strided_slice %0 {offsets = [6, 0], sizes = [1, 256], strides = [1, 1]} : vector<8x256xf32> to vector<1x256xf32>
    %c27_83 = arith.constant 27 : index
    %456 = memref.load %arg0[%c27_83] : memref<40xf32, #tpu.memory_space<smem>>
    %457 = vector.broadcast %456 : f32 to vector<1x256xf32>
    %458 = arith.mulf %455, %457 : vector<1x256xf32>
    %459 = arith.addf %454, %458 : vector<1x256xf32>
    %460 = vector.extract_strided_slice %0 {offsets = [7, 0], sizes = [1, 256], strides = [1, 1]} : vector<8x256xf32> to vector<1x256xf32>
    %c37_84 = arith.constant 37 : index
    %461 = memref.load %arg0[%c37_84] : memref<40xf32, #tpu.memory_space<smem>>
    %462 = vector.broadcast %461 : f32 to vector<1x256xf32>
    %463 = arith.mulf %460, %462 : vector<1x256xf32>
    %464 = arith.addf %459, %463 : vector<1x256xf32>
    %cst_85 = arith.constant 0.000000e+00 : f32
    %cst_86 = arith.constant 6.000000e+00 : f32
    %465 = vector.broadcast %cst_85 : f32 to vector<1x256xf32>
    %466 = arith.maximumf %465, %464 : vector<1x256xf32>
    %467 = vector.broadcast %cst_86 : f32 to vector<1x256xf32>
    %468 = arith.minimumf %467, %466 : vector<1x256xf32>
    %469 = vector.extract_strided_slice %0 {offsets = [4, 0], sizes = [1, 256], strides = [1, 1]} : vector<8x256xf32> to vector<1x256xf32>
    %c8_87 = arith.constant 8 : index
    %470 = memref.load %arg0[%c8_87] : memref<40xf32, #tpu.memory_space<smem>>
    %471 = vector.broadcast %470 : f32 to vector<1x256xf32>
    %472 = arith.mulf %469, %471 : vector<1x256xf32>
    %c8_88 = arith.constant 8 : index
    %473 = memref.load %arg1[%c8_88] : memref<10xf32, #tpu.memory_space<smem>>
    %474 = vector.broadcast %473 : f32 to vector<1x256xf32>
    %475 = arith.addf %472, %474 : vector<1x256xf32>
    %476 = vector.extract_strided_slice %0 {offsets = [5, 0], sizes = [1, 256], strides = [1, 1]} : vector<8x256xf32> to vector<1x256xf32>
    %c18_89 = arith.constant 18 : index
    %477 = memref.load %arg0[%c18_89] : memref<40xf32, #tpu.memory_space<smem>>
    %478 = vector.broadcast %477 : f32 to vector<1x256xf32>
    %479 = arith.mulf %476, %478 : vector<1x256xf32>
    %480 = arith.addf %475, %479 : vector<1x256xf32>
    %481 = vector.extract_strided_slice %0 {offsets = [6, 0], sizes = [1, 256], strides = [1, 1]} : vector<8x256xf32> to vector<1x256xf32>
    %c28_90 = arith.constant 28 : index
    %482 = memref.load %arg0[%c28_90] : memref<40xf32, #tpu.memory_space<smem>>
    %483 = vector.broadcast %482 : f32 to vector<1x256xf32>
    %484 = arith.mulf %481, %483 : vector<1x256xf32>
    %485 = arith.addf %480, %484 : vector<1x256xf32>
    %486 = vector.extract_strided_slice %0 {offsets = [7, 0], sizes = [1, 256], strides = [1, 1]} : vector<8x256xf32> to vector<1x256xf32>
    %c38_91 = arith.constant 38 : index
    %487 = memref.load %arg0[%c38_91] : memref<40xf32, #tpu.memory_space<smem>>
    %488 = vector.broadcast %487 : f32 to vector<1x256xf32>
    %489 = arith.mulf %486, %488 : vector<1x256xf32>
    %490 = arith.addf %485, %489 : vector<1x256xf32>
    %cst_92 = arith.constant 0.000000e+00 : f32
    %cst_93 = arith.constant 6.000000e+00 : f32
    %491 = vector.broadcast %cst_92 : f32 to vector<1x256xf32>
    %492 = arith.maximumf %491, %490 : vector<1x256xf32>
    %493 = vector.broadcast %cst_93 : f32 to vector<1x256xf32>
    %494 = arith.minimumf %493, %492 : vector<1x256xf32>
    %495 = vector.extract_strided_slice %0 {offsets = [4, 0], sizes = [1, 256], strides = [1, 1]} : vector<8x256xf32> to vector<1x256xf32>
    %c9_94 = arith.constant 9 : index
    %496 = memref.load %arg0[%c9_94] : memref<40xf32, #tpu.memory_space<smem>>
    %497 = vector.broadcast %496 : f32 to vector<1x256xf32>
    %498 = arith.mulf %495, %497 : vector<1x256xf32>
    %c9_95 = arith.constant 9 : index
    %499 = memref.load %arg1[%c9_95] : memref<10xf32, #tpu.memory_space<smem>>
    %500 = vector.broadcast %499 : f32 to vector<1x256xf32>
    %501 = arith.addf %498, %500 : vector<1x256xf32>
    %502 = vector.extract_strided_slice %0 {offsets = [5, 0], sizes = [1, 256], strides = [1, 1]} : vector<8x256xf32> to vector<1x256xf32>
    %c19_96 = arith.constant 19 : index
    %503 = memref.load %arg0[%c19_96] : memref<40xf32, #tpu.memory_space<smem>>
    %504 = vector.broadcast %503 : f32 to vector<1x256xf32>
    %505 = arith.mulf %502, %504 : vector<1x256xf32>
    %506 = arith.addf %501, %505 : vector<1x256xf32>
    %507 = vector.extract_strided_slice %0 {offsets = [6, 0], sizes = [1, 256], strides = [1, 1]} : vector<8x256xf32> to vector<1x256xf32>
    %c29_97 = arith.constant 29 : index
    %508 = memref.load %arg0[%c29_97] : memref<40xf32, #tpu.memory_space<smem>>
    %509 = vector.broadcast %508 : f32 to vector<1x256xf32>
    %510 = arith.mulf %507, %509 : vector<1x256xf32>
    %511 = arith.addf %506, %510 : vector<1x256xf32>
    %512 = vector.extract_strided_slice %0 {offsets = [7, 0], sizes = [1, 256], strides = [1, 1]} : vector<8x256xf32> to vector<1x256xf32>
    %c39_98 = arith.constant 39 : index
    %513 = memref.load %arg0[%c39_98] : memref<40xf32, #tpu.memory_space<smem>>
    %514 = vector.broadcast %513 : f32 to vector<1x256xf32>
    %515 = arith.mulf %512, %514 : vector<1x256xf32>
    %516 = arith.addf %511, %515 : vector<1x256xf32>
    %cst_99 = arith.constant 0.000000e+00 : f32
    %cst_100 = arith.constant 6.000000e+00 : f32
    %517 = vector.broadcast %cst_99 : f32 to vector<1x256xf32>
    %518 = arith.maximumf %517, %516 : vector<1x256xf32>
    %519 = vector.broadcast %cst_100 : f32 to vector<1x256xf32>
    %520 = arith.minimumf %519, %518 : vector<1x256xf32>
    %521 = tpu.concatenate %26, %52, %78, %104, %130, %156, %182, %208, %234, %260, %286, %312, %338, %364, %390, %416 in 0 : vector<1x256xf32>, vector<1x256xf32>, vector<1x256xf32>, vector<1x256xf32>, vector<1x256xf32>, vector<1x256xf32>, vector<1x256xf32>, vector<1x256xf32>, vector<1x256xf32>, vector<1x256xf32>, vector<1x256xf32>, vector<1x256xf32>, vector<1x256xf32>, vector<1x256xf32>, vector<1x256xf32>, vector<1x256xf32> -> vector<16x256xf32>
    %522 = tpu.concatenate %442, %468, %494, %520 in 0 : vector<1x256xf32>, vector<1x256xf32>, vector<1x256xf32>, vector<1x256xf32> -> vector<4x256xf32>
    %523 = tpu.concatenate %521, %522 in 0 : vector<16x256xf32>, vector<4x256xf32> -> vector<20x256xf32>
    %c0_101 = arith.constant 0 : index
    %c0_102 = arith.constant 0 : index
    %524 = vector.load %arg3[%c0_101, %c0_102] : memref<20x256xf32, #tpu.memory_space<vmem>>, vector<20x256xf32>
    tpu.vector_store %arg3[%c0_101, %c0_102], %523 {strides = array<i32>} : memref<20x256xf32, #tpu.memory_space<vmem>>, vector<20x256xf32>,
    return
  }
}

</mosaic_0001>

<llo_original>
// kernel: tpu_custom_call.1
$region0: #{tpu_custom_call.1}
  #allocation0 [shape = 'u32[]', space=smem, size = 0x4, offset = 0x4, fixed_abs, tag = 'smem constant byte address 0x4 - core index']
  #allocation1 [shape = 'u32[144,128]{1,0:T(1,128)}', space=vmem, size = 0x12000, scoped, tag = 'internal scratch']
  %s0 = inlined_call_operand.hbm [shape: f32[40], index: 0, kind: input, shape index: {}]
  %s1 = inlined_call_operand.vmem [shape: f32[10], index: 1, kind: input, shape index: {}]
  %s2 = inlined_call_operand.hbm [shape: f32[8,256], index: 2, kind: input, shape index: {}]
  %s3 = inlined_call_operand.hbm [shape: f32[20,256], index: 3, kind: output, shape index: {}]
  %s4 = sld [smem:[#allocation0]]
  $region34: #{tpu_custom_call.1} parent=0
    _
  %s6 = ssub.s32 1, %s4
  %s7 = scalar_select 0, %s6, %s4
  $region1: #{tpu_custom_call.1} parent=0
    #allocation2 [shape = 'u8[512]{0}', space=smem, size = 0x200, scoped, tag = 'input window, operand 0, single buffered']
    #allocation3 [shape = 's32[1]{0}', space=sflag, size = 0x4, scoped, tag = 'scoped memory for tpu_custom_call.1']
    #allocation4 [shape = 's32[1]{0}', space=sflag, size = 0x4, scoped, tag = 'scoped memory for tpu_custom_call.1']
    #allocation5 [shape = 's32[1]{0}', space=sflag, size = 0x4, scoped, tag = 'scoped memory for tpu_custom_call.1']
    #allocation6 [shape = 's32[1]{0}', space=sflag, size = 0x4, scoped, tag = 'scoped memory for tpu_custom_call.1']
    #allocation7 [shape = 'u8[512]{0}', space=smem, size = 0x200, scoped, tag = 'input window, operand 1, single buffered']
    #allocation8 [shape = 'u8[8192]{0}', space=vmem, size = 0x2000, scoped, tag = 'input window, operand 2, single buffered']
    #allocation9 [shape = 'u8[24576]{0}', space=vmem, size = 0x6000, scoped, tag = 'output window, operand 0, single buffered']
    %8 = vsyncpa [#allocation5], 0
    %9 = vsyncpa [#allocation6], 0
    %10 = vsyncpa [#allocation3], 0
    %11 = vsyncpa [#allocation4], 0
    // Predicated region
    $region2: #{tpu_custom_call.1} parent=1 // pred_check
      _
    $region3: #{tpu_custom_call.1} parent=1 // pred_check_branch
      %13 = sbr.rel (0) target = $region5
    $region4: #{tpu_custom_call.1} parent=1 // pred_region
      %s15 = ssub.s32 16, 16
      %16 = vsyncadd [#allocation5], %s15
      %19 = dma.hbm_to_smem %s0, 16, [#allocation2], [#allocation5]
    $region5: #{tpu_custom_call.1} parent=1 // pred_fallthru
      _
    // Predicated region
    $region6: #{tpu_custom_call.1} parent=1 // pred_check
      _
    $region7: #{tpu_custom_call.1} parent=1 // pred_check_branch
      %21 = sbr.rel (0) target = $region9
    $region8: #{tpu_custom_call.1} parent=1 // pred_region
      %s23 = ssub.s32 16, 16
      %24 = vsyncadd [#allocation6], %s23
      %s26 = sshll.u32 %s1, 4
      %s27 = int_to_ptr.vmem [resolvable:$true] %s26
      %29 = dma.vmem_to_smem %s27, 16, [#allocation7], [#allocation6]
    $region9: #{tpu_custom_call.1} parent=1 // pred_fallthru
      _
    // Predicated region
    $region10: #{tpu_custom_call.1} parent=1 // pred_check
      _
    $region11: #{tpu_custom_call.1} parent=1 // pred_check_branch
      %31 = sbr.rel (0) target = $region13
    $region12: #{tpu_custom_call.1} parent=1 // pred_region
      %s33 = ssub.s32 256, 256
      %34 = vsyncadd [#allocation3], %s33
      %s36 = sshll.u32 [#allocation8], 4
      %s37 = int_to_ptr.vmem [resolvable:$true] %s36
      %39 = dma.hbm_to_vmem [thread:$0]  %s2, 256, %s37, [#allocation3]
    $region13: #{tpu_custom_call.1} parent=1 // pred_fallthru
      _
    // Predicated region
    $region14: #{tpu_custom_call.1} parent=1 // pred_check
      _
    $region15: #{tpu_custom_call.1} parent=1 // pred_check_branch
      %41 = sbr.rel (0) target = $region17
    $region16: #{tpu_custom_call.1} parent=1 // pred_region
      %42 = dma.done [#allocation5], 16
    $region17: #{tpu_custom_call.1} parent=1 // pred_fallthru
      _
    // Predicated region
    $region18: #{tpu_custom_call.1} parent=1 // pred_check
      _
    $region19: #{tpu_custom_call.1} parent=1 // pred_check_branch
      %44 = sbr.rel (0) target = $region21
    $region20: #{tpu_custom_call.1} parent=1 // pred_region
      %45 = dma.done [#allocation6], 16
    $region21: #{tpu_custom_call.1} parent=1 // pred_fallthru
      _
    // Predicated region
    $region22: #{tpu_custom_call.1} parent=1 // pred_check
      _
    $region23: #{tpu_custom_call.1} parent=1 // pred_check_branch
      %47 = sbr.rel (0) target = $region25
    $region24: #{tpu_custom_call.1} parent=1 // pred_region
      %48 = dma.done [#allocation3], 256
    $region25: #{tpu_custom_call.1} parent=1 // pred_fallthru
      _
    %49 = sfence
    %v50 = vld [vmem:[#allocation8] sm:$0xff]
    %v51 = vld [vmem:[#allocation8 + $0x8] sm:$0xff]
    %s52 = sld [smem:[#allocation2]]
    %v53 = vstv %s52
    %v54 = vmul.f32 %v50, %v53
    %v55 = vmul.f32 %v51, %v53
    %s56 = sld [smem:[#allocation7]]
    %v57 = vstv %s56
    %v58 = vadd.f32 %v54, %v57
    %v59 = vadd.f32 %v55, %v57
    %s60 = sld [smem:[#allocation2 + $0xa]]
    %v61 = vstv %s60
    %v62 = vmul.f32 %v50, %v61
    %v63 = vmul.f32 %v51, %v61
    %v66 = vrot.slane %v62, 1
    %v67 = vrot.slane %v63, 1
    %v70 = vadd.f32 %v58, %v66
    %v71 = vadd.f32 %v59, %v67
    %s72 = sld [smem:[#allocation2 + $0x14]]
    %v73 = vstv %s72
    %v74 = vmul.f32 %v50, %v73
    %v75 = vmul.f32 %v51, %v73
    %v78 = vrot.slane %v74, 2
    %v79 = vrot.slane %v75, 2
    %v82 = vadd.f32 %v70, %v78
    %v83 = vadd.f32 %v71, %v79
    %s84 = sld [smem:[#allocation2 + $0x1e]]
    %v85 = vstv %s84
    %v86 = vmul.f32 %v50, %v85
    %v87 = vmul.f32 %v51, %v85
    %v90 = vrot.slane %v86, 3
    %v91 = vrot.slane %v87, 3
    %v94 = vadd.f32 %v82, %v90
    %v95 = vadd.f32 %v83, %v91
    %v96 = vmax.f32 %v94, 0.0
    %v97 = vmax.f32 %v95, 0.0
    %v98 = vmin.f32 %v96, 6.0
    %v99 = vmin.f32 %v97, 6.0
    %s100 = sld [smem:[#allocation2 + $0x1]]
    %v101 = vstv %s100
    %v102 = vmul.f32 %v50, %v101
    %v103 = vmul.f32 %v51, %v101
    %s104 = sld [smem:[#allocation7 + $0x1]]
    %v105 = vstv %s104
    %v106 = vadd.f32 %v102, %v105
    %v107 = vadd.f32 %v103, %v105
    %s108 = sld [smem:[#allocation2 + $0xb]]
    %v109 = vstv %s108
    %v110 = vmul.f32 %v50, %v109
    %v111 = vmul.f32 %v51, %v109
    %v114 = vrot.slane %v110, 1
    %v115 = vrot.slane %v111, 1
    %v118 = vadd.f32 %v106, %v114
    %v119 = vadd.f32 %v107, %v115
    %s120 = sld [smem:[#allocation2 + $0x15]]
    %v121 = vstv %s120
    %v122 = vmul.f32 %v50, %v121
    %v123 = vmul.f32 %v51, %v121
    %v126 = vrot.slane %v122, 2
    %v127 = vrot.slane %v123, 2
    %v130 = vadd.f32 %v118, %v126
    %v131 = vadd.f32 %v119, %v127
    %s132 = sld [smem:[#allocation2 + $0x1f]]
    %v133 = vstv %s132
    %v134 = vmul.f32 %v50, %v133
    %v135 = vmul.f32 %v51, %v133
    %v138 = vrot.slane %v134, 3
    %v139 = vrot.slane %v135, 3
    %v142 = vadd.f32 %v130, %v138
    %v143 = vadd.f32 %v131, %v139
    %v144 = vmax.f32 %v142, 0.0
    %v145 = vmax.f32 %v143, 0.0
    %v146 = vmin.f32 %v144, 6.0
    %v147 = vmin.f32 %v145, 6.0
    %s148 = sld [smem:[#allocation2 + $0x2]]
    %v149 = vstv %s148
    %v150 = vmul.f32 %v50, %v149
    %v151 = vmul.f32 %v51, %v149
    %s152 = sld [smem:[#allocation7 + $0x2]]
    %v153 = vstv %s152
    %v154 = vadd.f32 %v150, %v153
    %v155 = vadd.f32 %v151, %v153
    %s156 = sld [smem:[#allocation2 + $0xc]]
    %v157 = vstv %s156
    %v158 = vmul.f32 %v50, %v157
    %v159 = vmul.f32 %v51, %v157
    %v162 = vrot.slane %v158, 1
    %v163 = vrot.slane %v159, 1
    %v166 = vadd.f32 %v154, %v162
    %v167 = vadd.f32 %v155, %v163
    %s168 = sld [smem:[#allocation2 + $0x16]]
    %v169 = vstv %s168
    %v170 = vmul.f32 %v50, %v169
    %v171 = vmul.f32 %v51, %v169
    %v174 = vrot.slane %v170, 2
    %v175 = vrot.slane %v171, 2
    %v178 = vadd.f32 %v166, %v174
    %v179 = vadd.f32 %v167, %v175
    %s180 = sld [smem:[#allocation2 + $0x20]]
    %v181 = vstv %s180
    %v182 = vmul.f32 %v50, %v181
    %v183 = vmul.f32 %v51, %v181
    %v186 = vrot.slane %v182, 3
    %v187 = vrot.slane %v183, 3
    %v190 = vadd.f32 %v178, %v186
    %v191 = vadd.f32 %v179, %v187
    %v192 = vmax.f32 %v190, 0.0
    %v193 = vmax.f32 %v191, 0.0
    %v194 = vmin.f32 %v192, 6.0
    %v195 = vmin.f32 %v193, 6.0
    %s196 = sld [smem:[#allocation2 + $0x3]]
    %v197 = vstv %s196
    %v198 = vmul.f32 %v50, %v197
    %v199 = vmul.f32 %v51, %v197
    %s200 = sld [smem:[#allocation7 + $0x3]]
    %v201 = vstv %s200
    %v202 = vadd.f32 %v198, %v201
    %v203 = vadd.f32 %v199, %v201
    %s204 = sld [smem:[#allocation2 + $0xd]]
    %v205 = vstv %s204
    %v206 = vmul.f32 %v50, %v205
    %v207 = vmul.f32 %v51, %v205
    %v210 = vrot.slane %v206, 1
    %v211 = vrot.slane %v207, 1
    %v214 = vadd.f32 %v202, %v210
    %v215 = vadd.f32 %v203, %v211
    %s216 = sld [smem:[#allocation2 + $0x17]]
    %v217 = vstv %s216
    %v218 = vmul.f32 %v50, %v217
    %v219 = vmul.f32 %v51, %v217
    %v222 = vrot.slane %v218, 2
    %v223 = vrot.slane %v219, 2
    %v226 = vadd.f32 %v214, %v222
    %v227 = vadd.f32 %v215, %v223
    %s228 = sld [smem:[#allocation2 + $0x21]]
    %v229 = vstv %s228
    %v230 = vmul.f32 %v50, %v229
    %v231 = vmul.f32 %v51, %v229
    %v234 = vrot.slane %v230, 3
    %v235 = vrot.slane %v231, 3
    %v238 = vadd.f32 %v226, %v234
    %v239 = vadd.f32 %v227, %v235
    %v240 = vmax.f32 %v238, 0.0
    %v241 = vmax.f32 %v239, 0.0
    %v242 = vmin.f32 %v240, 6.0
    %v243 = vmin.f32 %v241, 6.0
    %s244 = sld [smem:[#allocation2 + $0x4]]
    %v245 = vstv %s244
    %v246 = vmul.f32 %v50, %v245
    %v247 = vmul.f32 %v51, %v245
    %s248 = sld [smem:[#allocation7 + $0x4]]
    %v249 = vstv %s248
    %v250 = vadd.f32 %v246, %v249
    %v251 = vadd.f32 %v247, %v249
    %s252 = sld [smem:[#allocation2 + $0xe]]
    %v253 = vstv %s252
    %v254 = vmul.f32 %v50, %v253
    %v255 = vmul.f32 %v51, %v253
    %v258 = vrot.slane %v254, 1
    %v259 = vrot.slane %v255, 1
    %v262 = vadd.f32 %v250, %v258
    %v263 = vadd.f32 %v251, %v259
    %s264 = sld [smem:[#allocation2 + $0x18]]
    %v265 = vstv %s264
    %v266 = vmul.f32 %v50, %v265
    %v267 = vmul.f32 %v51, %v265
    %v270 = vrot.slane %v266, 2
    %v271 = vrot.slane %v267, 2
    %v274 = vadd.f32 %v262, %v270
    %v275 = vadd.f32 %v263, %v271
    %s276 = sld [smem:[#allocation2 + $0x22]]
    %v277 = vstv %s276
    %v278 = vmul.f32 %v50, %v277
    %v279 = vmul.f32 %v51, %v277
    %v282 = vrot.slane %v278, 3
    %v283 = vrot.slane %v279, 3
    %v286 = vadd.f32 %v274, %v282
    %v287 = vadd.f32 %v275, %v283
    %v288 = vmax.f32 %v286, 0.0
    %v289 = vmax.f32 %v287, 0.0
    %v290 = vmin.f32 %v288, 6.0
    %v291 = vmin.f32 %v289, 6.0
    %s292 = sld [smem:[#allocation2 + $0x5]]
    %v293 = vstv %s292
    %v294 = vmul.f32 %v50, %v293
    %v295 = vmul.f32 %v51, %v293
    %s296 = sld [smem:[#allocation7 + $0x5]]
    %v297 = vstv %s296
    %v298 = vadd.f32 %v294, %v297
    %v299 = vadd.f32 %v295, %v297
    %s300 = sld [smem:[#allocation2 + $0xf]]
    %v301 = vstv %s300
    %v302 = vmul.f32 %v50, %v301
    %v303 = vmul.f32 %v51, %v301
    %v306 = vrot.slane %v302, 1
    %v307 = vrot.slane %v303, 1
    %v310 = vadd.f32 %v298, %v306
    %v311 = vadd.f32 %v299, %v307
    %s312 = sld [smem:[#allocation2 + $0x19]]
    %v313 = vstv %s312
    %v314 = vmul.f32 %v50, %v313
    %v315 = vmul.f32 %v51, %v313
    %v318 = vrot.slane %v314, 2
    %v319 = vrot.slane %v315, 2
    %v322 = vadd.f32 %v310, %v318
    %v323 = vadd.f32 %v311, %v319
    %s324 = sld [smem:[#allocation2 + $0x23]]
    %v325 = vstv %s324
    %v326 = vmul.f32 %v50, %v325
    %v327 = vmul.f32 %v51, %v325
    %v330 = vrot.slane %v326, 3
    %v331 = vrot.slane %v327, 3
    %v334 = vadd.f32 %v322, %v330
    %v335 = vadd.f32 %v323, %v331
    %v336 = vmax.f32 %v334, 0.0
    %v337 = vmax.f32 %v335, 0.0
    %v338 = vmin.f32 %v336, 6.0
    %v339 = vmin.f32 %v337, 6.0
    %s340 = sld [smem:[#allocation2 + $0x6]]
    %v341 = vstv %s340
    %v342 = vmul.f32 %v50, %v341
    %v343 = vmul.f32 %v51, %v341
    %s344 = sld [smem:[#allocation7 + $0x6]]
    %v345 = vstv %s344
    %v346 = vadd.f32 %v342, %v345
    %v347 = vadd.f32 %v343, %v345
    %s348 = sld [smem:[#allocation2 + $0x10]]
    %v349 = vstv %s348
    %v350 = vmul.f32 %v50, %v349
    %v351 = vmul.f32 %v51, %v349
    %v354 = vrot.slane %v350, 1
    %v355 = vrot.slane %v351, 1
    %v358 = vadd.f32 %v346, %v354
    %v359 = vadd.f32 %v347, %v355
    %s360 = sld [smem:[#allocation2 + $0x1a]]
    %v361 = vstv %s360
    %v362 = vmul.f32 %v50, %v361
    %v363 = vmul.f32 %v51, %v361
    %v366 = vrot.slane %v362, 2
    %v367 = vrot.slane %v363, 2
    %v370 = vadd.f32 %v358, %v366
    %v371 = vadd.f32 %v359, %v367
    %s372 = sld [smem:[#allocation2 + $0x24]]
    %v373 = vstv %s372
    %v374 = vmul.f32 %v50, %v373
    %v375 = vmul.f32 %v51, %v373
    %v378 = vrot.slane %v374, 3
    %v379 = vrot.slane %v375, 3
    %v382 = vadd.f32 %v370, %v378
    %v383 = vadd.f32 %v371, %v379
    %v384 = vmax.f32 %v382, 0.0
    %v385 = vmax.f32 %v383, 0.0
    %v386 = vmin.f32 %v384, 6.0
    %v387 = vmin.f32 %v385, 6.0
    %s388 = sld [smem:[#allocation2 + $0x7]]
    %v389 = vstv %s388
    %v390 = vmul.f32 %v50, %v389
    %v391 = vmul.f32 %v51, %v389
    %s392 = sld [smem:[#allocation7 + $0x7]]
    %v393 = vstv %s392
    %v394 = vadd.f32 %v390, %v393
    %v395 = vadd.f32 %v391, %v393
    %s396 = sld [smem:[#allocation2 + $0x11]]
    %v397 = vstv %s396
    %v398 = vmul.f32 %v50, %v397
    %v399 = vmul.f32 %v51, %v397
    %v402 = vrot.slane %v398, 1
    %v403 = vrot.slane %v399, 1
    %v406 = vadd.f32 %v394, %v402
    %v407 = vadd.f32 %v395, %v403
    %s408 = sld [smem:[#allocation2 + $0x1b]]
    %v409 = vstv %s408
    %v410 = vmul.f32 %v50, %v409
    %v411 = vmul.f32 %v51, %v409
    %v414 = vrot.slane %v410, 2
    %v415 = vrot.slane %v411, 2
    %v418 = vadd.f32 %v406, %v414
    %v419 = vadd.f32 %v407, %v415
    %s420 = sld [smem:[#allocation2 + $0x25]]
    %v421 = vstv %s420
    %v422 = vmul.f32 %v50, %v421
    %v423 = vmul.f32 %v51, %v421
    %v426 = vrot.slane %v422, 3
    %v427 = vrot.slane %v423, 3
    %v430 = vadd.f32 %v418, %v426
    %v431 = vadd.f32 %v419, %v427
    %v432 = vmax.f32 %v430, 0.0
    %v433 = vmax.f32 %v431, 0.0
    %v434 = vmin.f32 %v432, 6.0
    %v435 = vmin.f32 %v433, 6.0
    %s436 = sld [smem:[#allocation2 + $0x8]]
    %v437 = vstv %s436
    %v438 = vmul.f32 %v50, %v437
    %v439 = vmul.f32 %v51, %v437
    %s440 = sld [smem:[#allocation7 + $0x8]]
    %v441 = vstv %s440
    %v442 = vadd.f32 %v438, %v441
    %v443 = vadd.f32 %v439, %v441
    %s444 = sld [smem:[#allocation2 + $0x12]]
    %v445 = vstv %s444
    %v446 = vmul.f32 %v50, %v445
    %v447 = vmul.f32 %v51, %v445
    %v450 = vrot.slane %v446, 1
    %v451 = vrot.slane %v447, 1
    %v454 = vadd.f32 %v442, %v450
    %v455 = vadd.f32 %v443, %v451
    %s456 = sld [smem:[#allocation2 + $0x1c]]
    %v457 = vstv %s456
    %v458 = vmul.f32 %v50, %v457
    %v459 = vmul.f32 %v51, %v457
    %v462 = vrot.slane %v458, 2
    %v463 = vrot.slane %v459, 2
    %v466 = vadd.f32 %v454, %v462
    %v467 = vadd.f32 %v455, %v463
    %s468 = sld [smem:[#allocation2 + $0x26]]
    %v469 = vstv %s468
    %v470 = vmul.f32 %v50, %v469
    %v471 = vmul.f32 %v51, %v469
    %v474 = vrot.slane %v470, 3
    %v475 = vrot.slane %v471, 3
    %v478 = vadd.f32 %v466, %v474
    %v479 = vadd.f32 %v467, %v475
    %v480 = vmax.f32 %v478, 0.0
    %v481 = vmax.f32 %v479, 0.0
    %v482 = vmin.f32 %v480, 6.0
    %v483 = vmin.f32 %v481, 6.0
    %s484 = sld [smem:[#allocation2 + $0x9]]
    %v485 = vstv %s484
    %v486 = vmul.f32 %v50, %v485
    %v487 = vmul.f32 %v51, %v485
    %s488 = sld [smem:[#allocation7 + $0x9]]
    %v489 = vstv %s488
    %v490 = vadd.f32 %v486, %v489
    %v491 = vadd.f32 %v487, %v489
    %s492 = sld [smem:[#allocation2 + $0x13]]
    %v493 = vstv %s492
    %v494 = vmul.f32 %v50, %v493
    %v495 = vmul.f32 %v51, %v493
    %v498 = vrot.slane %v494, 1
    %v499 = vrot.slane %v495, 1
    %v502 = vadd.f32 %v490, %v498
    %v503 = vadd.f32 %v491, %v499
    %s504 = sld [smem:[#allocation2 + $0x1d]]
    %v505 = vstv %s504
    %v506 = vmul.f32 %v50, %v505
    %v507 = vmul.f32 %v51, %v505
    %v510 = vrot.slane %v506, 2
    %v511 = vrot.slane %v507, 2
    %v514 = vadd.f32 %v502, %v510
    %v515 = vadd.f32 %v503, %v511
    %s516 = sld [smem:[#allocation2 + $0x27]]
    %v517 = vstv %s516
    %v518 = vmul.f32 %v50, %v517
    %v519 = vmul.f32 %v51, %v517
    %v522 = vrot.slane %v518, 3
    %v523 = vrot.slane %v519, 3
    %v526 = vadd.f32 %v514, %v522
    %v527 = vadd.f32 %v515, %v523
    %v528 = vmax.f32 %v526, 0.0
    %v529 = vmax.f32 %v527, 0.0
    %v530 = vmin.f32 %v528, 6.0
    %v531 = vmin.f32 %v529, 6.0
    %v534 = vrot.slane %v146, 7
    %v535 = vrot.slane %v147, 7
    %v540 = vrot.slane %v194, 6
    %v541 = vrot.slane %v195, 6
    %v546 = vrot.slane %v242, 5
    %v547 = vrot.slane %v243, 5
    %v552 = vrot.slane %v290, 4
    %v553 = vrot.slane %v291, 4
    %v558 = vrot.slane %v338, 3
    %v559 = vrot.slane %v339, 3
    %v564 = vrot.slane %v386, 2
    %v565 = vrot.slane %v387, 2
    %v570 = vrot.slane %v434, 1
    %v571 = vrot.slane %v435, 1
    %v576 = vrot.slane %v530, 7
    %v577 = vrot.slane %v531, 7
    %v582 = vrot.slane %v98, 2
    %v583 = vrot.slane %v99, 2
    %v586 = vrot.slane %v146, 1
    %v587 = vrot.slane %v147, 1
    %v590 = vrot.slane %v242, 7
    %v591 = vrot.slane %v243, 7
    %v594 = vrot.slane %v290, 6
    %v595 = vrot.slane %v291, 6
    %v598 = vrot.slane %v338, 5
    %v599 = vrot.slane %v339, 5
    %vm602 = vcmask 1040384
    %v603 = vsel %vm602, %v98, %v534
    %v604 = vsel %vm602, %v99, %v535
    %vm605 = vcmask 1041408
    %v606 = vsel %vm605, %v603, %v540
    %v607 = vsel %vm605, %v604, %v541
    %vm608 = vcmask 1042432
    %v609 = vsel %vm608, %v606, %v546
    %v610 = vsel %vm608, %v607, %v547
    %vm611 = vcmask 1043456
    %v612 = vsel %vm611, %v609, %v552
    %v613 = vsel %vm611, %v610, %v553
    %vm614 = vcmask 1044480
    %v615 = vsel %vm614, %v612, %v558
    %v616 = vsel %vm614, %v613, %v559
    %vm617 = vcmask 1045504
    %v618 = vsel %vm617, %v615, %v564
    %v619 = vsel %vm617, %v616, %v565
    %vm620 = vcmask 1046528
    %v621 = vsel %vm620, %v618, %v570
    %v622 = vsel %vm620, %v619, %v571
    %v623 = vsel %vm602, %v482, %v576
    %v624 = vsel %vm602, %v483, %v577
    %v625 = vsel %vm605, %v623, %v582
    %v626 = vsel %vm605, %v624, %v583
    %v627 = vsel %vm608, %v625, %v586
    %v628 = vsel %vm608, %v626, %v587
    %v629 = vsel %vm611, %v627, %v194
    %v630 = vsel %vm611, %v628, %v195
    %v631 = vsel %vm614, %v629, %v590
    %v632 = vsel %vm614, %v630, %v591
    %v633 = vsel %vm617, %v631, %v594
    %v634 = vsel %vm617, %v632, %v595
    %v635 = vsel %vm620, %v633, %v598
    %v636 = vsel %vm620, %v634, %v599
    %v637 = vrot.slane %v386, 4
    %v638 = vrot.slane %v387, 4
    %v641 = vrot.slane %v434, 3
    %v642 = vrot.slane %v435, 3
    %v647 = vrot.slane %v482, 2
    %v648 = vrot.slane %v483, 2
    %v651 = vrot.slane %v530, 1
    %v652 = vrot.slane %v531, 1
    %v655 = vsel %vm602, %v637, %v641
    %v656 = vsel %vm602, %v638, %v642
    %v657 = vsel %vm605, %v655, %v647
    %v658 = vsel %vm605, %v656, %v648
    %v659 = vsel %vm608, %v657, %v651
    %v660 = vsel %vm608, %v658, %v652
    %661 = vst [vmem:[#allocation9] sm:$0xff] %v621
    %662 = vst [vmem:[#allocation9 + $0x8] sm:$0xff] %v622
    %663 = vst [vmem:[#allocation9 + $0x10] sm:$0xff] %v635
    %664 = vst [vmem:[#allocation9 + $0x18] sm:$0xff] %v636
    %665 = vst [vmem:[#allocation9 + $0x20] sm:$0xf] %v659
    %666 = vst [vmem:[#allocation9 + $0x28] sm:$0xf] %v660
    // Predicated region
    $region26: #{tpu_custom_call.1} parent=1 // pred_check
      _
    $region27: #{tpu_custom_call.1} parent=1 // pred_check_branch
      %668 = sbr.rel (0) target = $region29
    $region28: #{tpu_custom_call.1} parent=1 // pred_region
      %s670 = ssub.s32 768, 768
      %671 = vsyncadd [#allocation4], %s670
      %s672 = sshll.u32 [#allocation9], 4
      %s673 = int_to_ptr.vmem [resolvable:$true] %s672
      %678 = dma.vmem_to_hbm [thread:$0]  %s673, 768, %s3, [#allocation4], 256, 256, 16
    $region29: #{tpu_custom_call.1} parent=1 // pred_fallthru
      _
    // Predicated region
    $region30: #{tpu_custom_call.1} parent=1 // pred_check
      _
    $region31: #{tpu_custom_call.1} parent=1 // pred_check_branch
      %680 = sbr.rel (0) target = $region33
    $region32: #{tpu_custom_call.1} parent=1 // pred_region
      %681 = dma.done [#allocation4], 768
    $region33: #{tpu_custom_call.1} parent=1 // pred_fallthru
      _
    %682 = vsyncpa [#allocation3], 1
    %683 = vsyncpa [#allocation4], 1
    %684 = vsyncpa [#allocation5], 1
    %685 = vsyncpa [#allocation6], 1

</llo_original>
